<compile_context>
chip_gen: v7x
topology: tpu7x:2x2x1
jax: 0.10.0
libtpu: 0.0.40
codegen_flags: <defaults>
</compile_context>

<pallas_src>
import math

import jax
import jax.numpy as jnp
from jax.experimental import pallas as pl
from jax.experimental.pallas import tpu as pltpu

_LANES = 128
_TARGET_BLOCK_BYTES = 4 << 20   # ~4 MiB per (padded) input/output tile
_MIN_SPLIT_BYTES = 2 << 20      # force >=2 grid blocks above this (v7x: 2 TCs)
_VMEM_LIMIT_BYTES = 32 * 1024 * 1024


def _drop_path_kernel(scale_ref, x_ref, o_ref):
    """scale_ref: (TB, 1) f32; x_ref/o_ref: (TB, TILE_F) tiles of (B, feat)."""
    x = x_ref[...].astype(jnp.float32)
    o_ref[...] = (x * scale_ref[...]).astype(o_ref.dtype)


def _round_up(n, m):
    return -(-n // m) * m


def _pick_fold(batch, feat, gran):
    """Fold factor g: view (B, feat) as (B*g, feat//g) so the sublane dim >= gran."""
    if batch >= gran or feat < 2 * _LANES:
        return 1
    target_g = -(-gran // batch)
    for g in range(target_g, min(feat, target_g * 16) + 1):
        if feat % g == 0 and feat // g >= _LANES:
            return g
    return 1


def _pick_tiles(batch, feat, itemsize, gran):
    """Choose (TB, TILE_F) honoring the (sublane, 128) block constraint.

    Tiles are budgeted against the *padded* (sublane/lane-rounded) VMEM
    footprint: ~4 MiB per tile -> in+out double-buffered ~16 MiB < 32 MiB limit.
    """
    tb = batch if batch <= gran else gran
    tb_pad = _round_up(tb, gran)
    max_tf = max(_LANES, (_TARGET_BLOCK_BYTES // (tb_pad * itemsize)) // _LANES * _LANES)
    tf = feat if feat <= max_tf else max_tf
    tf_pad = _round_up(tf, _LANES)
    # Large batch: batch more rows per step to amortize the ~0.35us/step overhead.
    if batch > gran:
        while tb * 2 <= batch and (tb * 2) * tf_pad * itemsize <= _TARGET_BLOCK_BYTES:
            tb *= 2
    # v7x has 2 TensorCores: guarantee >= 2 blocks along a "parallel" axis for
    # medium/large tensors so both cores engage (no-op on 1-TC chips).
    if batch * feat * itemsize > _MIN_SPLIT_BYTES:
        if pl.cdiv(batch, tb) * pl.cdiv(feat, tf) < 2:
            if feat >= 2 * _LANES:
                tf = _round_up(pl.cdiv(feat, 2), _LANES)
            elif batch >= 2 * gran:
                tb = _round_up(pl.cdiv(batch, 2), gran)
    return tb, tf


def drop_path(x, drop_prob: float = 0.0, training: bool = False, *, key=None):
    """Same semantics as the PyTorch `drop_path` (per-sample stochastic depth)."""
    if drop_prob == 0.0 or not training:
        return x
    if not (0.0 <= drop_prob < 1.0):
        # drop_prob == 1.0 would give keep_prob == 0 -> inf/NaN (same hazard as torch ref)
        raise ValueError(f"drop_prob must be in [0, 1), got {drop_prob}")
    if key is None:
        raise ValueError("drop_path in training mode needs a PRNG key")
    keep_prob = 1.0 - float(drop_prob)

    B = x.shape[0]
    feat = math.prod(x.shape[1:]) if x.ndim > 1 else 1
    feat = max(feat, 1)

    # Per-sample scale: floor(keep_prob + U[0,1)) / keep_prob  in {0, 1/keep_prob}.
    # Tiny (B elements) -> negligible work outside the kernel.
    u = jax.random.uniform(key, (B, 1), dtype=jnp.float32)
    scale = jnp.floor(keep_prob + u) * (1.0 / keep_prob)

    itemsize = jnp.dtype(x.dtype).itemsize
    gran = max(8, 32 // itemsize)          # sublane granularity (f32: 8, bf16: 16, i8: 32)

    # Small batch: fold feature rows into the batch axis to fill sublanes/vregs.
    g = _pick_fold(B, feat, gran)
    Bp, featp = B * g, feat // g
    x_flat = x.reshape(Bp, featp)          # contiguous row-major reshape
    scale_k = scale if g == 1 else jnp.repeat(scale, g, axis=0)

    tb, tf = _pick_tiles(Bp, featp, itemsize, gran)

    out_flat = pl.pallas_call(
        _drop_path_kernel,
        out_shape=jax.ShapeDtypeStruct((Bp, featp), x.dtype),
        grid=(pl.cdiv(Bp, tb), pl.cdiv(featp, tf)),
        in_specs=[
            pl.BlockSpec((tb, 1), lambda i, j: (i, 0)),    # per-sample scale (f32)
            pl.BlockSpec((tb, tf), lambda i, j: (i, j)),   # data tile
        ],
        out_specs=pl.BlockSpec((tb, tf), lambda i, j: (i, j)),
        compiler_params=pltpu.CompilerParams(
            dimension_semantics=("parallel", "parallel"),
            vmem_limit_bytes=_VMEM_LIMIT_BYTES,
        ),
    )(scale_k, x_flat)

    return out_flat.reshape(x.shape)


class DropPath:
    """Drop paths (Stochastic Depth) per sample."""

    def __init__(self, drop_prob=None):
        self.drop_prob = drop_prob
        self.training = True  # mimic nn.Module training flag

    def __call__(self, x, key=None):
        p = self.drop_prob if self.drop_prob is not None else 0.0
        return drop_path(x, p, self.training, key=key)


def _check_semantics(out, x, keep_prob, rtol=1e-5, atol=1e-5):
    out32 = jnp.asarray(out, jnp.float32)
    x32 = jnp.asarray(x, jnp.float32)
    ok = True
    for b in range(x.shape[0]):
        kept = bool(jnp.allclose(out32[b], x32[b] / keep_prob, rtol=rtol, atol=atol))
        dropped = bool(jnp.allclose(out32[b], 0.0, atol=atol))
        ok = ok and (kept or dropped)
    return ok


if __name__ == "__main__":
    key = jax.random.PRNGKey(0)
    k_x, k_d1, k_x2, k_d2, k_x3, k_d3, k_x4, k_d4 = jax.random.split(key, 8)

    keep_prob = 1.0 - 0.2
    module = DropPath(drop_prob=0.2)
    module.training = True
    ok = True

    # 1) small batch f32: exercises the small-batch fold (B=2 -> (8, 256))
    x = jax.random.normal(k_x, (2, 4, 16, 16), dtype=jnp.float32)
    out = jax.block_until_ready(module(x, key=k_d1))
    ok = ok and out.shape == x.shape and out.dtype == x.dtype
    ok = ok and _check_semantics(out, x, keep_prob)

    # 2) non-lane-aligned feature dim (feat = 3*5*7 = 105): full-extent block path
    x2 = jax.random.normal(k_x2, (2, 3, 5, 7), dtype=jnp.float32)
    out2 = jax.block_until_ready(module(x2, key=k_d2))
    ok = ok and out2.shape == x2.shape and _check_semantics(out2, x2, keep_prob)

    # 3) bf16 input: exercises dtype-aware sublane granularity + f32 multiply
    x3 = jax.random.normal(k_x3, (16, 8, 128), dtype=jnp.bfloat16)
    out3 = jax.block_until_ready(module(x3, key=k_d3))
    ok = ok and out3.dtype == jnp.bfloat16
    ok = ok and _check_semantics(out3, x3, keep_prob, rtol=1e-2, atol=1e-2)

    # 4) ~4 MiB tensor: exercises the >=2-block grid split (v7x dual-core path)
    x4 = jax.random.normal(k_x4, (16, 64, 1024), dtype=jnp.float32)
    out4 = jax.block_until_ready(module(x4, key=k_d4))
    ok = ok and _check_semantics(out4, x4, keep_prob)

    # 5) eval mode (or drop_prob == 0): identity
    module.training = False
    out_eval = jax.block_until_ready(module(x, key=k_d1))
    ok = ok and bool(jnp.array_equal(out_eval, x))

    if ok:
        print("KERNEL_OK")
    else:
        raise SystemExit("drop_path semantics check failed")
</pallas_src>

<mosaic_0001>
module attributes {stable_mosaic.version = 11 : i64} {
  func.func @_drop_path_kernel(%arg0: i32, %arg1: i32, %arg2: memref<8x1xf32, #tpu.memory_space<vmem>>, %arg3: memref<8x256xf32, #tpu.memory_space<vmem>>, %arg4: memref<8x256xf32, #tpu.memory_space<vmem>>) attributes {dimension_semantics = [#tpu.dimension_semantics<parallel>, #tpu.dimension_semantics<parallel>], iteration_bounds = array<i64: 1, 1>, scalar_prefetch = 0 : i64, scratch_operands = 0 : i64, tpu.core_type = #tpu.core_type<tc>, window_params = [{transform_indices = @transform_0, window_bounds = array<i64: 8, 1>}, {transform_indices = @transform_1, window_bounds = array<i64: 8, 256>}, {transform_indices = @transform_2, window_bounds = array<i64: 8, 256>}]} {
    %c0 = arith.constant 0 : index
    %c0_0 = arith.constant 0 : index
    %0 = vector.load %arg3[%c0, %c0_0] : memref<8x256xf32, #tpu.memory_space<vmem>>, vector<8x256xf32>
    %c0_1 = arith.constant 0 : index
    %c0_2 = arith.constant 0 : index
    %1 = vector.load %arg2[%c0_1, %c0_2] : memref<8x1xf32, #tpu.memory_space<vmem>>, vector<8x1xf32>
    %2 = vector.broadcast %1 : vector<8x1xf32> to vector<8x256xf32>
    %3 = arith.mulf %0, %2 : vector<8x256xf32>
    %c0_3 = arith.constant 0 : index
    %c0_4 = arith.constant 0 : index
    %4 = vector.load %arg4[%c0_3, %c0_4] : memref<8x256xf32, #tpu.memory_space<vmem>>, vector<8x256xf32>
    tpu.vector_store %arg4[%c0_3, %c0_4], %3 {strides = array<i32>} : memref<8x256xf32, #tpu.memory_space<vmem>>, vector<8x256xf32>,
    return
  }
  func.func @transform_0(%arg0: i32, %arg1: i32) -> (i32, i32) {
    %c0_i32 = arith.constant 0 : i32
    %c0_i32_0 = arith.constant 0 : i32
    return %arg0, %c0_i32 : i32, i32
  }
  func.func @transform_1(%arg0: i32, %arg1: i32) -> (i32, i32) {
    %c0_i32 = arith.constant 0 : i32
    return %arg0, %arg1 : i32, i32
  }
  func.func @transform_2(%arg0: i32, %arg1: i32) -> (i32, i32) {
    %c0_i32 = arith.constant 0 : i32
    return %arg0, %arg1 : i32, i32
  }
}

</mosaic_0001>

<llo_original>
// kernel: tpu_custom_call.1
$region0: #{tpu_custom_call.1}
  #allocation0 [shape = 'u32[]', space=smem, size = 0x4, offset = 0x4, fixed_abs, tag = 'smem constant byte address 0x4 - core index']
  #allocation1 [shape = 'u32[144,128]{1,0:T(1,128)}', space=vmem, size = 0x12000, scoped, tag = 'internal scratch']
  %s0 = inlined_call_operand.vmem [shape: f32[8,1], index: 0, kind: input, shape index: {}]
  %s1 = inlined_call_operand.hbm [shape: f32[8,256], index: 1, kind: input, shape index: {}]
  %s2 = inlined_call_operand.hbm [shape: f32[8,256], index: 2, kind: output, shape index: {}]
  %s3 = sld [smem:[#allocation0]]
  $region22: #{tpu_custom_call.1} parent=0
    _
  %s5 = ssub.s32 1, %s3
  %s6 = scalar_select 0, %s5, %s3
  $region1: #{tpu_custom_call.1} parent=0
    #allocation2 [shape = 'u8[8192]{0}', space=vmem, size = 0x2000, scoped, tag = 'input window, operand 1, single buffered']
    #allocation3 [shape = 's32[1]{0}', space=sflag, size = 0x4, scoped, tag = 'scoped memory for tpu_custom_call.1']
    #allocation4 [shape = 's32[1]{0}', space=sflag, size = 0x4, scoped, tag = 'scoped memory for tpu_custom_call.1']
    #allocation5 [shape = 'u8[8192]{0}', space=vmem, size = 0x2000, scoped, tag = 'output window, operand 0, single buffered']
    %7 = vsyncpa [#allocation3], 0
    %8 = vsyncpa [#allocation4], 0
    // Predicated region
    $region2: #{tpu_custom_call.1} parent=1 // pred_check
      _
    $region3: #{tpu_custom_call.1} parent=1 // pred_check_branch
      %10 = sbr.rel (0) target = $region5
    $region4: #{tpu_custom_call.1} parent=1 // pred_region
      _
    $region5: #{tpu_custom_call.1} parent=1 // pred_fallthru
      _
    // Predicated region
    $region6: #{tpu_custom_call.1} parent=1 // pred_check
      _
    $region7: #{tpu_custom_call.1} parent=1 // pred_check_branch
      %12 = sbr.rel (0) target = $region9
    $region8: #{tpu_custom_call.1} parent=1 // pred_region
      %s14 = ssub.s32 256, 256
      %15 = vsyncadd [#allocation3], %s14
      %s17 = sshll.u32 [#allocation2], 4
      %s18 = int_to_ptr.vmem [resolvable:$true] %s17
      %20 = dma.hbm_to_vmem [thread:$0]  %s1, 256, %s18, [#allocation3]
    $region9: #{tpu_custom_call.1} parent=1 // pred_fallthru
      _
    // Predicated region
    $region10: #{tpu_custom_call.1} parent=1 // pred_check
      _
    $region11: #{tpu_custom_call.1} parent=1 // pred_check_branch
      %22 = sbr.rel (0) target = $region13
    $region12: #{tpu_custom_call.1} parent=1 // pred_region
      %23 = dma.done [#allocation3], 256
    $region13: #{tpu_custom_call.1} parent=1 // pred_fallthru
      _
    %v24 = vld [vmem:[#allocation2] sm:$0xff]
    %v25 = vld [vmem:[#allocation2 + $0x8] sm:$0xff]
    %v26 = vld [vmem:[%s0] sm:$0xff]
    %28 = vset.pattern.permute.xlu0 0
    %29 = vperm.xlu0 %28, %v26
    %v30 = vpop.permute.xlu0 %29
    %v32 = vmul.f32 %v24, %v30
    %v33 = vmul.f32 %v25, %v30
    %34 = vst [vmem:[#allocation5] sm:$0xff] %v32
    %35 = vst [vmem:[#allocation5 + $0x8] sm:$0xff] %v33
    // Predicated region
    $region14: #{tpu_custom_call.1} parent=1 // pred_check
      _
    $region15: #{tpu_custom_call.1} parent=1 // pred_check_branch
      %37 = sbr.rel (0) target = $region17
    $region16: #{tpu_custom_call.1} parent=1 // pred_region
      %s39 = ssub.s32 256, 256
      %40 = vsyncadd [#allocation4], %s39
      %s42 = sshll.u32 [#allocation5], 4
      %s43 = int_to_ptr.vmem [resolvable:$true] %s42
      %45 = dma.vmem_to_hbm [thread:$0]  %s43, 256, %s2, [#allocation4]
    $region17: #{tpu_custom_call.1} parent=1 // pred_fallthru
      _
    // Predicated region
    $region18: #{tpu_custom_call.1} parent=1 // pred_check
      _
    $region19: #{tpu_custom_call.1} parent=1 // pred_check_branch
      %47 = sbr.rel (0) target = $region21
    $region20: #{tpu_custom_call.1} parent=1 // pred_region
      %48 = dma.done [#allocation4], 256
    $region21: #{tpu_custom_call.1} parent=1 // pred_fallthru
      _
    %49 = vsyncpa [#allocation3], 1
    %50 = vsyncpa [#allocation4], 1

</llo_original>
